<compile_context>
chip_gen: v6e
topology: v6e:2x2x1
jax: 0.10.0
libtpu: 0.0.40
codegen_flags: <defaults>
</compile_context>

<pallas_src>
import functools

import jax
import jax.numpy as jnp
from jax import lax
from jax.experimental import pallas as pl
from jax.experimental.pallas import tpu as pltpu  # noqa: F401  (TPU-specific params when grid is added)

LANE = 128


def _round_up(x, m):
    return (x + m - 1) // m * m


# ----------------------------------------------------------------------------
# Fused kernel: MLP (Linear -> store pre-act -> ReLU) ... Linear -> APPNP prop
# ----------------------------------------------------------------------------
def _fused_appnp_kernel(*refs, num_layers: int, k: int, alpha: float):
    # refs layout:
    #   inputs : a_scaled(bf16, already (1-alpha)*A_hat), x, (Wt_l, b_l) per layer
    #   outputs: h_pre_1 .. h_pre_{num_layers-1}, h_out
    n_in = 2 + 2 * num_layers
    a_ref, x_ref = refs[0], refs[1]
    w_refs = refs[2:n_in:2]
    b_refs = refs[3:n_in:2]
    hpre_refs = refs[n_in:n_in + num_layers - 1]
    out_ref = refs[-1]

    # --- Linear stack (kept resident; only pre-activations are stored to HBM) ---
    h = x_ref[...]                                              # f32
    for l in range(num_layers):
        # cast lhs to the weight dtype (f32 for layer 0, bf16 for later layers);
        # MXU accumulates in f32 via preferred_element_type.
        h_in = h.astype(w_refs[l].dtype)
        h = jnp.dot(h_in, w_refs[l][...],
                    preferred_element_type=jnp.float32) + b_refs[l][...]
        if l != num_layers - 1:
            hpre_refs[l][...] = h.astype(hpre_refs[l].dtype)    # h_list[l] (pre-activation)
            h = jnp.maximum(h, 0.0)                             # activation; dropout = identity (eval)

    # --- APPNP propagation: h <- A_sc @ h + alpha * h0  (A_sc = (1-alpha)*A_hat) ---
    a = a_ref[...]                          # bf16 pre-scaled adjacency, MXU-native
    h0 = h
    alpha_h0 = jnp.float32(alpha) * h0      # hoisted out of the loop

    def body(_, hc):
        ah = jnp.dot(a, hc.astype(jnp.bfloat16),
                     preferred_element_type=jnp.float32)
        return ah + alpha_h0                # (1-alpha) already folded into `a`

    h = lax.fori_loop(0, k, body, h0, unroll=True)
    out_ref[...] = h.astype(out_ref.dtype)


# ----------------------------------------------------------------------------
# Parameter prep (done once): transpose + zero-pad to lane-dense widths.
# Layer 0 stays f32 (h_list[0] precision); deeper layers stored as bf16.
# ----------------------------------------------------------------------------
def prepare_params(params):
    """(W [Fout,Fin], b [Fout]) -> (Wt_pad [Fin_p,Fout_p], b_pad [1,Fout_p]) + true dims."""
    prepped, dims = [], []
    for l, (w, b) in enumerate(params):
        fout, fin = w.shape
        fin_p, fout_p = _round_up(fin, LANE), _round_up(fout, LANE)
        w_dtype = jnp.float32 if l == 0 else jnp.bfloat16
        wt = jnp.pad(jnp.transpose(w).astype(jnp.float32),
                     ((0, fin_p - fin), (0, fout_p - fout))).astype(w_dtype)
        bp = jnp.pad(b.astype(jnp.float32), (0, fout_p - fout)).reshape(1, fout_p)
        prepped.append((wt, bp))
        dims.append((fin, fout))
    return prepped, dims


# ----------------------------------------------------------------------------
# Forward builder: one pallas_call, jitted wrapper for pad/cast/slice glue
# ----------------------------------------------------------------------------
def build_appnp_forward(dims, n, *, k=10, alpha=0.1):
    num_layers = len(dims)
    fin0 = dims[0][0]
    fin0_p = _round_up(fin0, LANE)
    fout_p = [_round_up(fo, LANE) for _, fo in dims]

    kernel = functools.partial(_fused_appnp_kernel,
                               num_layers=num_layers, k=k, alpha=alpha)

    # Full-array blocks (everything fits comfortably in VMEM at these sizes).
    in_specs = [pl.BlockSpec((n, n), lambda: (0, 0)),        # (1-alpha)*A_hat (bf16)
                pl.BlockSpec((n, fin0_p), lambda: (0, 0))]   # padded feats
    for fi, _ in dims:
        fi_p = _round_up(fi, LANE)
        in_specs += [pl.BlockSpec((fi_p, fout_p[len(in_specs) // 2 - 1]), lambda: (0, 0)),
                     pl.BlockSpec((1, fout_p[len(in_specs) // 2 - 1]), lambda: (0, 0))]
    # (rebuild cleanly to avoid the index arithmetic above being fragile)
    in_specs = [pl.BlockSpec((n, n), lambda: (0, 0)),
                pl.BlockSpec((n, fin0_p), lambda: (0, 0))]
    for l, (fi, _) in enumerate(dims):
        fi_p = _round_up(fi, LANE)
        fo_p = fout_p[l]
        in_specs += [pl.BlockSpec((fi_p, fo_p), lambda: (0, 0)),
                     pl.BlockSpec((1, fo_p), lambda: (0, 0))]

    out_shapes = tuple(
        [jax.ShapeDtypeStruct((n, fout_p[l]), jnp.float32) for l in range(num_layers - 1)]
        + [jax.ShapeDtypeStruct((n, fout_p[-1]), jnp.float32)])
    out_specs = tuple(
        [pl.BlockSpec((n, fout_p[l]), lambda: (0, 0)) for l in range(num_layers - 1)]
        + [pl.BlockSpec((n, fout_p[-1]), lambda: (0, 0))])

    call = pl.pallas_call(kernel,
                          out_shape=out_shapes,
                          in_specs=in_specs,
                          out_specs=out_specs)

    @jax.jit
    def forward(a_hat, feats, prepped):
        # fold (1-alpha) into A once; bf16 is MXU-native.
        a_scaled_bf16 = ((1.0 - alpha) * a_hat).astype(jnp.bfloat16)
        x = jnp.pad(feats.astype(jnp.float32), ((0, 0), (0, fin0_p - fin0)))
        flat = []
        for wt, bp in prepped:
            flat += [wt, bp]
        outs = call(a_scaled_bf16, x, *flat)
        h_list = [outs[l][:, :dims[l][1]] for l in range(num_layers - 1)]
        h_out = outs[-1][:, :dims[-1][1]]
        return h_list, h_out

    return forward


# ----------------------------------------------------------------------------
# Deterministic parameter / data construction
# ----------------------------------------------------------------------------
def init_params(key, num_layers, input_dim, hidden_dim, output_dim):
    """nn.Linear-style init: U(-1/sqrt(fan_in), 1/sqrt(fan_in)) for W and b."""
    params = []
    layer_dims = ([(input_dim, output_dim)] if num_layers == 1 else
                  [(input_dim, hidden_dim)]
                  + [(hidden_dim, hidden_dim)] * (num_layers - 2)
                  + [(hidden_dim, output_dim)])
    for fin, fout in layer_dims:
        key, kw, kb = jax.random.split(key, 3)
        bound = 1.0 / jnp.sqrt(fin)
        w = jax.random.uniform(kw, (fout, fin), jnp.float32, -bound, bound)
        b = jax.random.uniform(kb, (fout,), jnp.float32, -bound, bound)
        params.append((w, b))
    return params


def build_normalized_adjacency(key, n):
    """Random symmetric graph -> D^{-1/2} (A + I) D^{-1/2} (dense)."""
    logits = jax.random.uniform(key, (n, n))
    a = (logits > 0.7).astype(jnp.float32)
    a = jnp.maximum(a, a.T)
    a = a + jnp.eye(n, dtype=jnp.float32)
    deg = jnp.sum(a, axis=1)
    d_inv_sqrt = 1.0 / jnp.sqrt(deg)
    return a * d_inv_sqrt[:, None] * d_inv_sqrt[None, :]


if __name__ == "__main__":
    N = 64            # number of graph nodes
    INPUT_DIM = 32
    HIDDEN_DIM = 32
    OUTPUT_DIM = 16
    NUM_LAYERS = 2
    K = 10
    ALPHA = 0.1

    root = jax.random.PRNGKey(0)
    k_feat, k_graph, k_param = jax.random.split(root, 3)

    feats = jax.random.normal(k_feat, (N, INPUT_DIM), jnp.float32)
    a_hat = build_normalized_adjacency(k_graph, N)
    params = init_params(k_param, NUM_LAYERS, INPUT_DIM, HIDDEN_DIM, OUTPUT_DIM)

    prepped, dims = prepare_params(params)
    forward = build_appnp_forward(dims, N, k=K, alpha=ALPHA)

    h_list, h_out = forward(a_hat, feats, prepped)
    jax.block_until_ready(h_out)
    for hl in h_list:
        jax.block_until_ready(hl)

    # ---- sanity checks ------------------------------------------------------
    # pure-f32 semantic reference (matches the PyTorch module math)
    ref_pre = feats @ params[0][0].T + params[0][1]
    ref_h = jnp.maximum(ref_pre, 0.0) @ params[1][0].T + params[1][1]
    h0 = ref_h
    for _ in range(K):
        ref_h = (1.0 - ALPHA) * (a_hat @ ref_h) + ALPHA * h0

    # precision-matched reference (kernel recipe: bf16 layer-1 operands,
    # (1-alpha)-pre-scaled bf16 A, bf16 h per step, f32 accumulation)
    relu0 = jnp.maximum(ref_pre, 0.0)
    h0_bf = jnp.dot(relu0.astype(jnp.bfloat16),
                    params[1][0].T.astype(jnp.bfloat16),
                    preferred_element_type=jnp.float32) + params[1][1]
    a_sc_bf = ((1.0 - ALPHA) * a_hat).astype(jnp.bfloat16)
    alpha_h0 = ALPHA * h0_bf
    ref_h_bf = h0_bf
    for _ in range(K):
        ref_h_bf = jnp.dot(a_sc_bf, ref_h_bf.astype(jnp.bfloat16),
                           preferred_element_type=jnp.float32) + alpha_h0

    assert h_list[0].shape == (N, HIDDEN_DIM)
    assert h_out.shape == (N, OUTPUT_DIM)
    assert jnp.allclose(h_list[0], ref_pre, atol=1e-4, rtol=1e-4)
    assert jnp.allclose(h_out, ref_h_bf, atol=1e-3, rtol=1e-3)   # exact recipe match
    assert jnp.allclose(h_out, ref_h, atol=5e-2, rtol=5e-2)      # semantic (f32) match

    print("KERNEL_OK")
</pallas_src>

<mosaic_0001>
module attributes {stable_mosaic.version = 11 : i64} {
  func.func @_fused_appnp_kernel(%arg0: memref<64x64xbf16, #tpu.memory_space<vmem>>, %arg1: memref<64x128xf32, #tpu.memory_space<vmem>>, %arg2: memref<128x128xf32, #tpu.memory_space<vmem>>, %arg3: memref<1x128xf32, #tpu.memory_space<vmem>>, %arg4: memref<128x128xbf16, #tpu.memory_space<vmem>>, %arg5: memref<1x128xf32, #tpu.memory_space<vmem>>, %arg6: memref<64x128xf32, #tpu.memory_space<vmem>>, %arg7: memref<64x128xf32, #tpu.memory_space<vmem>>) attributes {dimension_semantics = [], scalar_prefetch = 0 : i64, scratch_operands = 0 : i64, tpu.core_type = #tpu.core_type<tc>} {
    %c0 = arith.constant 0 : index
    %c0_0 = arith.constant 0 : index
    %0 = vector.load %arg1[%c0, %c0_0] : memref<64x128xf32, #tpu.memory_space<vmem>>, vector<64x128xf32>
    %c0_1 = arith.constant 0 : index
    %c0_2 = arith.constant 0 : index
    %1 = vector.load %arg2[%c0_1, %c0_2] : memref<128x128xf32, #tpu.memory_space<vmem>>, vector<128x128xf32>
    %cst = arith.constant dense<0.000000e+00> : vector<64x128xf32>
    %2 = tpu.matmul %0, %1, %cst {dimension_numbers = #tpu.dot_dimension_numbers<[1], [0], [0], [1], [0, 0, 1, 1], [], []>} : vector<64x128xf32>, vector<128x128xf32>, vector<64x128xf32> -> vector<64x128xf32>
    %c0_3 = arith.constant 0 : index
    %c0_4 = arith.constant 0 : index
    %3 = vector.load %arg3[%c0_3, %c0_4] : memref<1x128xf32, #tpu.memory_space<vmem>>, vector<1x128xf32>
    %4 = vector.broadcast %3 : vector<1x128xf32> to vector<64x128xf32>
    %5 = arith.addf %2, %4 : vector<64x128xf32>
    %c0_5 = arith.constant 0 : index
    %c0_6 = arith.constant 0 : index
    %6 = vector.load %arg6[%c0_5, %c0_6] : memref<64x128xf32, #tpu.memory_space<vmem>>, vector<64x128xf32>
    tpu.vector_store %arg6[%c0_5, %c0_6], %5 {strides = array<i32>} : memref<64x128xf32, #tpu.memory_space<vmem>>, vector<64x128xf32>,
    %cst_7 = arith.constant 0.000000e+00 : f32
    %7 = vector.broadcast %cst_7 : f32 to vector<64x128xf32>
    %8 = arith.maximumf %5, %7 : vector<64x128xf32>
    %9 = arith.truncf %8 : vector<64x128xf32> to vector<64x128xbf16>
    %c0_8 = arith.constant 0 : index
    %c0_9 = arith.constant 0 : index
    %10 = vector.load %arg4[%c0_8, %c0_9] : memref<128x128xbf16, #tpu.memory_space<vmem>>, vector<128x128xbf16>
    %cst_10 = arith.constant dense<0.000000e+00> : vector<64x128xf32>
    %11 = tpu.matmul %9, %10, %cst_10 {dimension_numbers = #tpu.dot_dimension_numbers<[1], [0], [0], [1], [0, 0, 1, 1], [], []>} : vector<64x128xbf16>, vector<128x128xbf16>, vector<64x128xf32> -> vector<64x128xf32>
    %c0_11 = arith.constant 0 : index
    %c0_12 = arith.constant 0 : index
    %12 = vector.load %arg5[%c0_11, %c0_12] : memref<1x128xf32, #tpu.memory_space<vmem>>, vector<1x128xf32>
    %13 = vector.broadcast %12 : vector<1x128xf32> to vector<64x128xf32>
    %14 = arith.addf %11, %13 : vector<64x128xf32>
    %c0_13 = arith.constant 0 : index
    %c0_14 = arith.constant 0 : index
    %15 = vector.load %arg0[%c0_13, %c0_14] : memref<64x64xbf16, #tpu.memory_space<vmem>>, vector<64x64xbf16>
    %cst_15 = arith.constant 1.000000e-01 : f32
    %16 = vector.broadcast %cst_15 : f32 to vector<64x128xf32>
    %17 = arith.mulf %16, %14 : vector<64x128xf32>
    %c0_i32 = arith.constant 0 : i32
    %18 = arith.truncf %14 : vector<64x128xf32> to vector<64x128xbf16>
    %cst_16 = arith.constant dense<0.000000e+00> : vector<64x128xf32>
    %19 = tpu.matmul %15, %18, %cst_16 {dimension_numbers = #tpu.dot_dimension_numbers<[1], [0], [0], [1], [0, 0, 1, 1], [], []>} : vector<64x64xbf16>, vector<64x128xbf16>, vector<64x128xf32> -> vector<64x128xf32>
    %20 = arith.addf %19, %17 : vector<64x128xf32>
    %c1_i32 = arith.constant 1 : i32
    %21 = arith.truncf %20 : vector<64x128xf32> to vector<64x128xbf16>
    %cst_17 = arith.constant dense<0.000000e+00> : vector<64x128xf32>
    %22 = tpu.matmul %15, %21, %cst_17 {dimension_numbers = #tpu.dot_dimension_numbers<[1], [0], [0], [1], [0, 0, 1, 1], [], []>} : vector<64x64xbf16>, vector<64x128xbf16>, vector<64x128xf32> -> vector<64x128xf32>
    %23 = arith.addf %22, %17 : vector<64x128xf32>
    %c2_i32 = arith.constant 2 : i32
    %24 = arith.truncf %23 : vector<64x128xf32> to vector<64x128xbf16>
    %cst_18 = arith.constant dense<0.000000e+00> : vector<64x128xf32>
    %25 = tpu.matmul %15, %24, %cst_18 {dimension_numbers = #tpu.dot_dimension_numbers<[1], [0], [0], [1], [0, 0, 1, 1], [], []>} : vector<64x64xbf16>, vector<64x128xbf16>, vector<64x128xf32> -> vector<64x128xf32>
    %26 = arith.addf %25, %17 : vector<64x128xf32>
    %c3_i32 = arith.constant 3 : i32
    %27 = arith.truncf %26 : vector<64x128xf32> to vector<64x128xbf16>
    %cst_19 = arith.constant dense<0.000000e+00> : vector<64x128xf32>
    %28 = tpu.matmul %15, %27, %cst_19 {dimension_numbers = #tpu.dot_dimension_numbers<[1], [0], [0], [1], [0, 0, 1, 1], [], []>} : vector<64x64xbf16>, vector<64x128xbf16>, vector<64x128xf32> -> vector<64x128xf32>
    %29 = arith.addf %28, %17 : vector<64x128xf32>
    %c4_i32 = arith.constant 4 : i32
    %30 = arith.truncf %29 : vector<64x128xf32> to vector<64x128xbf16>
    %cst_20 = arith.constant dense<0.000000e+00> : vector<64x128xf32>
    %31 = tpu.matmul %15, %30, %cst_20 {dimension_numbers = #tpu.dot_dimension_numbers<[1], [0], [0], [1], [0, 0, 1, 1], [], []>} : vector<64x64xbf16>, vector<64x128xbf16>, vector<64x128xf32> -> vector<64x128xf32>
    %32 = arith.addf %31, %17 : vector<64x128xf32>
    %c5_i32 = arith.constant 5 : i32
    %33 = arith.truncf %32 : vector<64x128xf32> to vector<64x128xbf16>
    %cst_21 = arith.constant dense<0.000000e+00> : vector<64x128xf32>
    %34 = tpu.matmul %15, %33, %cst_21 {dimension_numbers = #tpu.dot_dimension_numbers<[1], [0], [0], [1], [0, 0, 1, 1], [], []>} : vector<64x64xbf16>, vector<64x128xbf16>, vector<64x128xf32> -> vector<64x128xf32>
    %35 = arith.addf %34, %17 : vector<64x128xf32>
    %c6_i32 = arith.constant 6 : i32
    %36 = arith.truncf %35 : vector<64x128xf32> to vector<64x128xbf16>
    %cst_22 = arith.constant dense<0.000000e+00> : vector<64x128xf32>
    %37 = tpu.matmul %15, %36, %cst_22 {dimension_numbers = #tpu.dot_dimension_numbers<[1], [0], [0], [1], [0, 0, 1, 1], [], []>} : vector<64x64xbf16>, vector<64x128xbf16>, vector<64x128xf32> -> vector<64x128xf32>
    %38 = arith.addf %37, %17 : vector<64x128xf32>
    %c7_i32 = arith.constant 7 : i32
    %39 = arith.truncf %38 : vector<64x128xf32> to vector<64x128xbf16>
    %cst_23 = arith.constant dense<0.000000e+00> : vector<64x128xf32>
    %40 = tpu.matmul %15, %39, %cst_23 {dimension_numbers = #tpu.dot_dimension_numbers<[1], [0], [0], [1], [0, 0, 1, 1], [], []>} : vector<64x64xbf16>, vector<64x128xbf16>, vector<64x128xf32> -> vector<64x128xf32>
    %41 = arith.addf %40, %17 : vector<64x128xf32>
    %c8_i32 = arith.constant 8 : i32
    %42 = arith.truncf %41 : vector<64x128xf32> to vector<64x128xbf16>
    %cst_24 = arith.constant dense<0.000000e+00> : vector<64x128xf32>
    %43 = tpu.matmul %15, %42, %cst_24 {dimension_numbers = #tpu.dot_dimension_numbers<[1], [0], [0], [1], [0, 0, 1, 1], [], []>} : vector<64x64xbf16>, vector<64x128xbf16>, vector<64x128xf32> -> vector<64x128xf32>
    %44 = arith.addf %43, %17 : vector<64x128xf32>
    %c9_i32 = arith.constant 9 : i32
    %45 = arith.truncf %44 : vector<64x128xf32> to vector<64x128xbf16>
    %cst_25 = arith.constant dense<0.000000e+00> : vector<64x128xf32>
    %46 = tpu.matmul %15, %45, %cst_25 {dimension_numbers = #tpu.dot_dimension_numbers<[1], [0], [0], [1], [0, 0, 1, 1], [], []>} : vector<64x64xbf16>, vector<64x128xbf16>, vector<64x128xf32> -> vector<64x128xf32>
    %47 = arith.addf %46, %17 : vector<64x128xf32>
    %c0_26 = arith.constant 0 : index
    %c0_27 = arith.constant 0 : index
    %48 = vector.load %arg7[%c0_26, %c0_27] : memref<64x128xf32, #tpu.memory_space<vmem>>, vector<64x128xf32>
    tpu.vector_store %arg7[%c0_26, %c0_27], %47 {strides = array<i32>} : memref<64x128xf32, #tpu.memory_space<vmem>>, vector<64x128xf32>,
    return
  }
}

</mosaic_0001>

<llo_original>
// kernel: forward.1
$region0: #{forward.1}
  #allocation0 [shape = 'u32[]', space=smem, size = 0x4, offset = 0x4, fixed_abs, tag = 'smem constant byte address 0x4 - core index']
  #allocation1 [shape = 'u32[144,128]{1,0:T(1,128)}', space=vmem, size = 0x12000, scoped, tag = 'internal scratch']
  %s0 = inlined_call_operand.vmem [shape: bf16[64,64], index: 0, kind: input, shape index: {}]
  %s1 = inlined_call_operand.vmem [shape: f32[64,128], index: 1, kind: input, shape index: {}]
  %s2 = inlined_call_operand.vmem [shape: f32[128,128], index: 2, kind: input, shape index: {}]
  %s3 = inlined_call_operand.vmem [shape: f32[1,128], index: 3, kind: input, shape index: {}]
  %s4 = inlined_call_operand.vmem [shape: bf16[128,128], index: 4, kind: input, shape index: {}]
  %s5 = inlined_call_operand.vmem [shape: f32[1,128], index: 5, kind: input, shape index: {}]
  %s6 = inlined_call_operand.vmem [shape: f32[64,128], index: 6, kind: output, shape index: {0}]
  %s7 = inlined_call_operand.vmem [shape: f32[64,128], index: 7, kind: output, shape index: {1}]
  %8 = xla_tuple %s6, %s7
  %s9 = sld [smem:[#allocation0]]
  $region42: #{forward.1} parent=0
    _
  %s11 = ssub.s32 1, %s9
  %s12 = scalar_select 0, %s11, %s9
  // Predicated region
  $region2: #{forward.1} parent=0 // pred_check
    _
  $region3: #{forward.1} parent=0 // pred_check_branch
    %14 = sbr.rel (0) target = $region5
  $region4: #{forward.1} parent=0 // pred_region
    _
  $region5: #{forward.1} parent=0 // pred_fallthru
    _
  // Predicated region
  $region6: #{forward.1} parent=0 // pred_check
    _
  $region7: #{forward.1} parent=0 // pred_check_branch
    %16 = sbr.rel (0) target = $region9
  $region8: #{forward.1} parent=0 // pred_region
    _
  $region9: #{forward.1} parent=0 // pred_fallthru
    _
  // Predicated region
  $region10: #{forward.1} parent=0 // pred_check
    _
  $region11: #{forward.1} parent=0 // pred_check_branch
    %18 = sbr.rel (0) target = $region13
  $region12: #{forward.1} parent=0 // pred_region
    _
  $region13: #{forward.1} parent=0 // pred_fallthru
    _
  // Predicated region
  $region14: #{forward.1} parent=0 // pred_check
    _
  $region15: #{forward.1} parent=0 // pred_check_branch
    %20 = sbr.rel (0) target = $region17
  $region16: #{forward.1} parent=0 // pred_region
    _
  $region17: #{forward.1} parent=0 // pred_fallthru
    _
  // Predicated region
  $region18: #{forward.1} parent=0 // pred_check
    _
  $region19: #{forward.1} parent=0 // pred_check_branch
    %22 = sbr.rel (0) target = $region21
  $region20: #{forward.1} parent=0 // pred_region
    _
  $region21: #{forward.1} parent=0 // pred_fallthru
    _
  // Predicated region
  $region22: #{forward.1} parent=0 // pred_check
    _
  $region23: #{forward.1} parent=0 // pred_check_branch
    %24 = sbr.rel (0) target = $region25
  $region24: #{forward.1} parent=0 // pred_region
    _
  $region25: #{forward.1} parent=0 // pred_fallthru
    _
  %v26 = vld [vmem:[%s1] sm:$0xff]
  %v27 = vld [vmem:[%s1 + $0x8] sm:$0xff]
  %v28 = vld [vmem:[%s1 + $0x10] sm:$0xff]
  %v29 = vld [vmem:[%s1 + $0x18] sm:$0xff]
  %v30 = vld [vmem:[%s1 + $0x20] sm:$0xff]
  %v31 = vld [vmem:[%s1 + $0x28] sm:$0xff]
  %v32 = vld [vmem:[%s1 + $0x30] sm:$0xff]
  %v33 = vld [vmem:[%s1 + $0x38] sm:$0xff]
  %v34 = vld [vmem:[%s2] sm:$0xff]
  %v35 = vld [vmem:[%s2 + $0x8] sm:$0xff]
  %v36 = vld [vmem:[%s2 + $0x10] sm:$0xff]
  %v37 = vld [vmem:[%s2 + $0x18] sm:$0xff]
  %v38 = vld [vmem:[%s2 + $0x20] sm:$0xff]
  %v39 = vld [vmem:[%s2 + $0x28] sm:$0xff]
  %v40 = vld [vmem:[%s2 + $0x30] sm:$0xff]
  %v41 = vld [vmem:[%s2 + $0x38] sm:$0xff]
  %v42 = vld [vmem:[%s2 + $0x40] sm:$0xff]
  %v43 = vld [vmem:[%s2 + $0x48] sm:$0xff]
  %v44 = vld [vmem:[%s2 + $0x50] sm:$0xff]
  %v45 = vld [vmem:[%s2 + $0x58] sm:$0xff]
  %v46 = vld [vmem:[%s2 + $0x60] sm:$0xff]
  %v47 = vld [vmem:[%s2 + $0x68] sm:$0xff]
  %v48 = vld [vmem:[%s2 + $0x70] sm:$0xff]
  %v49 = vld [vmem:[%s2 + $0x78] sm:$0xff]
  %v50 = vld [vmem:[%s3] sm:$0x1]
  %v52 = vlaneseq
  %v53 = vshrl.u32 %v52, 7
  %v54 = vsub.s32 0, %v53
  %v55 = vrot.slane %v50, %v54
  %57 = vmatprep.subr.mxu0 0.0
  %58 = vmatpush1.msra.mxu0 %v49
  %59 = vmatprep.subr.mxu0 0.0
  %60 = vmatpush1.msra.mxu0 %v48
  %61 = vmatprep.subr.mxu0 0.0
  %62 = vmatpush1.msra.mxu0 %v47
  %63 = vmatprep.subr.mxu0 0.0
  %64 = vmatpush1.msra.mxu0 %v46
  %65 = vmatprep.subr.mxu0 0.0
  %66 = vmatpush1.msra.mxu0 %v45
  %67 = vmatprep.subr.mxu0 0.0
  %68 = vmatpush1.msra.mxu0 %v44
  %69 = vmatprep.subr.mxu0 0.0
  %70 = vmatpush1.msra.mxu0 %v43
  %71 = vmatprep.subr.mxu0 0.0
  %72 = vmatpush1.msra.mxu0 %v42
  %73 = vmatprep.subr.mxu0 0.0
  %74 = vmatpush1.msra.mxu0 %v41
  %75 = vmatprep.subr.mxu0 0.0
  %76 = vmatpush1.msra.mxu0 %v40
  %77 = vmatprep.subr.mxu0 0.0
  %78 = vmatpush1.msra.mxu0 %v39
  %79 = vmatprep.subr.mxu0 0.0
  %80 = vmatpush1.msra.mxu0 %v38
  %81 = vmatprep.subr.mxu0 0.0
  %82 = vmatpush1.msra.mxu0 %v37
  %83 = vmatprep.subr.mxu0 0.0
  %84 = vmatpush1.msra.mxu0 %v36
  %85 = vmatprep.subr.mxu0 0.0
  %86 = vmatpush1.msra.mxu0 %v35
  %87 = vmatprep.subr.mxu0 0.0
  %88 = vmatpush1.msra.mxu0 %v34
  %89 = vmatprep.subr.mxu0 0.0
  %90 = vmatpush2.msra.mxu0 0.0
  %91 = vmatprep.subr.mxu0 0.0
  %92 = vmatpush2.msra.mxu0 0.0
  %93 = vmatprep.subr.mxu0 0.0
  %94 = vmatpush2.msra.mxu0 0.0
  %95 = vmatprep.subr.mxu0 0.0
  %96 = vmatpush2.msra.mxu0 0.0
  %97 = vmatprep.subr.mxu0 0.0
  %98 = vmatpush2.msra.mxu0 0.0
  %99 = vmatprep.subr.mxu0 0.0
  %100 = vmatpush2.msra.mxu0 0.0
  %101 = vmatprep.subr.mxu0 0.0
  %102 = vmatpush2.msra.mxu0 0.0
  %103 = vmatprep.subr.mxu0 0.0
  %104 = vmatpush2.msra.mxu0 0.0
  %105 = vmatprep.subr.mxu0 0.0
  %106 = vmatpush2.msra.mxu0 0.0
  %107 = vmatprep.subr.mxu0 0.0
  %108 = vmatpush2.msra.mxu0 0.0
  %109 = vmatprep.subr.mxu0 0.0
  %110 = vmatpush2.msra.mxu0 0.0
  %111 = vmatprep.subr.mxu0 0.0
  %112 = vmatpush2.msra.mxu0 0.0
  %113 = vmatprep.subr.mxu0 0.0
  %114 = vmatpush2.msra.mxu0 0.0
  %115 = vmatprep.subr.mxu0 0.0
  %116 = vmatpush2.msra.mxu0 0.0
  %117 = vmatprep.subr.mxu0 0.0
  %118 = vmatpush2.msra.mxu0 0.0
  %119 = vmatprep.subr.mxu0 0.0
  %120 = vmatpush2.msra.mxu0 0.0
  %121 = vmatprep.mubr.f32.mxu0 0.0
  %122 = vmatmul.mubr.f32.gmra.mxu0 %v26
  %v123 = vpop.f32.mrf.mxu0
  %v124 = vadd.f32 %v55, %v123
  %v125 = vpop.f32.mrf.mxu0
  %126 = vmatprep.mubr.f32.mxu0 0.0
  %127 = vmatmul.mubr.f32.gmra.mxu0 %v27
  %v128 = vpop.f32.mrf.mxu0
  %v129 = vadd.f32 %v55, %v128
  %v130 = vpop.f32.mrf.mxu0
  %131 = vmatprep.mubr.f32.mxu0 0.0
  %132 = vmatmul.mubr.f32.gmra.mxu0 %v28
  %v133 = vpop.f32.mrf.mxu0
  %v134 = vadd.f32 %v55, %v133
  %v135 = vpop.f32.mrf.mxu0
  %136 = vmatprep.mubr.f32.mxu0 0.0
  %137 = vmatmul.mubr.f32.gmra.mxu0 %v29
  %v138 = vpop.f32.mrf.mxu0
  %v139 = vadd.f32 %v55, %v138
  %v140 = vpop.f32.mrf.mxu0
  %141 = vmatprep.mubr.f32.mxu0 0.0
  %142 = vmatmul.mubr.f32.gmra.mxu0 %v30
  %v143 = vpop.f32.mrf.mxu0
  %v144 = vadd.f32 %v55, %v143
  %v145 = vpop.f32.mrf.mxu0
  %146 = vmatprep.mubr.f32.mxu0 0.0
  %147 = vmatmul.mubr.f32.gmra.mxu0 %v31
  %v148 = vpop.f32.mrf.mxu0
  %v149 = vadd.f32 %v55, %v148
  %v150 = vpop.f32.mrf.mxu0
  %151 = vmatprep.mubr.f32.mxu0 0.0
  %152 = vmatmul.mubr.f32.gmra.mxu0 %v32
  %v153 = vpop.f32.mrf.mxu0
  %v154 = vadd.f32 %v55, %v153
  %v155 = vpop.f32.mrf.mxu0
  %156 = vmatprep.mubr.f32.mxu0 0.0
  %157 = vmatmul.mubr.f32.gmra.mxu0 %v33
  %v158 = vpop.f32.mrf.mxu0
  %v159 = vadd.f32 %v55, %v158
  %v160 = vpop.f32.mrf.mxu0
  %161 = vdwg.mxu0
  %162 = vst [vmem:[%s6] sm:$0xff] %v124
  %163 = vst [vmem:[%s6 + $0x8] sm:$0xff] %v129
  %164 = vst [vmem:[%s6 + $0x10] sm:$0xff] %v134
  %165 = vst [vmem:[%s6 + $0x18] sm:$0xff] %v139
  %166 = vst [vmem:[%s6 + $0x20] sm:$0xff] %v144
  %167 = vst [vmem:[%s6 + $0x28] sm:$0xff] %v149
  %168 = vst [vmem:[%s6 + $0x30] sm:$0xff] %v154
  %169 = vst [vmem:[%s6 + $0x38] sm:$0xff] %v159
  %v170 = vmax.f32 %v124, 0.0
  %v171 = vmax.f32 %v129, 0.0
  %v172 = vmax.f32 %v134, 0.0
  %v173 = vmax.f32 %v139, 0.0
  %v174 = vmax.f32 %v144, 0.0
  %v175 = vmax.f32 %v149, 0.0
  %v176 = vmax.f32 %v154, 0.0
  %v177 = vmax.f32 %v159, 0.0
  %v178 = vpack.c.bf16 %v171, %v170
  %v179 = vpack.c.bf16 %v173, %v172
  %v180 = vpack.c.bf16 %v175, %v174
  %v181 = vpack.c.bf16 %v177, %v176
  %v182 = vld [vmem:[%s4] sm:$0xf]
  %v183 = vld [vmem:[%s4 + $0x4] sm:$0xf]
  %v184 = vld [vmem:[%s4 + $0x8] sm:$0xf]
  %v185 = vld [vmem:[%s4 + $0xc] sm:$0xf]
  %v186 = vld [vmem:[%s4 + $0x10] sm:$0xf]
  %v187 = vld [vmem:[%s4 + $0x14] sm:$0xf]
  %v188 = vld [vmem:[%s4 + $0x18] sm:$0xf]
  %v189 = vld [vmem:[%s4 + $0x1c] sm:$0xf]
  %v190 = vld [vmem:[%s4 + $0x20] sm:$0xf]
  %v191 = vld [vmem:[%s4 + $0x24] sm:$0xf]
  %v192 = vld [vmem:[%s4 + $0x28] sm:$0xf]
  %v193 = vld [vmem:[%s4 + $0x2c] sm:$0xf]
  %v194 = vld [vmem:[%s4 + $0x30] sm:$0xf]
  %v195 = vld [vmem:[%s4 + $0x34] sm:$0xf]
  %v196 = vld [vmem:[%s4 + $0x38] sm:$0xf]
  %v197 = vld [vmem:[%s4 + $0x3c] sm:$0xf]
  %v198 = vld [vmem:[%s5] sm:$0x1]
  %v200 = vlaneseq
  %v201 = vshrl.u32 %v200, 7
  %v202 = vsub.s32 0, %v201
  %v203 = vrot.slane %v198, %v202
  %v221 = vunpack.c.l.b16 %v182
  %v222 = vunpack.c.l.b16 %v183
  %v223 = vunpack.c.l.b16 %v184
  %v224 = vunpack.c.l.b16 %v185
  %v225 = vunpack.c.l.b16 %v186
  %v226 = vunpack.c.l.b16 %v187
  %v227 = vunpack.c.l.b16 %v188
  %v228 = vunpack.c.l.b16 %v189
  %v229 = vunpack.c.l.b16 %v190
  %v230 = vunpack.c.l.b16 %v191
  %v231 = vunpack.c.l.b16 %v192
  %v232 = vunpack.c.l.b16 %v193
  %v233 = vunpack.c.l.b16 %v194
  %v234 = vunpack.c.l.b16 %v195
  %v235 = vunpack.c.l.b16 %v196
  %v236 = vunpack.c.l.b16 %v197
  %v237 = vpack.c.b16 %v222, %v221
  %v238 = vpack.c.b16 %v224, %v223
  %v239 = vpack.c.b16 %v226, %v225
  %v240 = vpack.c.b16 %v228, %v227
  %v241 = vpack.c.b16 %v230, %v229
  %v242 = vpack.c.b16 %v232, %v231
  %v243 = vpack.c.b16 %v234, %v233
  %v244 = vpack.c.b16 %v236, %v235
  %253 = vmatprep.subr.bf16.mxu0 0
  %254 = vmatpush1.bf16.msra.mxu0 %v244
  %255 = vmatprep.subr.bf16.mxu0 0
  %256 = vmatpush1.bf16.msra.mxu0 %v243
  %257 = vmatprep.subr.bf16.mxu0 0
  %258 = vmatpush1.bf16.msra.mxu0 %v242
  %259 = vmatprep.subr.bf16.mxu0 0
  %260 = vmatpush1.bf16.msra.mxu0 %v241
  %261 = vmatprep.subr.bf16.mxu0 0
  %262 = vmatpush1.bf16.msra.mxu0 %v240
  %263 = vmatprep.subr.bf16.mxu0 0
  %264 = vmatpush1.bf16.msra.mxu0 %v239
  %265 = vmatprep.subr.bf16.mxu0 0
  %266 = vmatpush1.bf16.msra.mxu0 %v238
  %267 = vmatprep.subr.bf16.mxu0 0
  %268 = vmatpush1.bf16.msra.mxu0 %v237
  %269 = vmatprep.subr.bf16.mxu0 0
  %270 = vmatpush2.bf16.msra.mxu0 0
  %271 = vmatprep.subr.bf16.mxu0 0
  %272 = vmatpush2.bf16.msra.mxu0 0
  %273 = vmatprep.subr.bf16.mxu0 0
  %274 = vmatpush2.bf16.msra.mxu0 0
  %275 = vmatprep.subr.bf16.mxu0 0
  %276 = vmatpush2.bf16.msra.mxu0 0
  %277 = vmatprep.subr.bf16.mxu0 0
  %278 = vmatpush2.bf16.msra.mxu0 0
  %279 = vmatprep.subr.bf16.mxu0 0
  %280 = vmatpush2.bf16.msra.mxu0 0
  %281 = vmatprep.subr.bf16.mxu0 0
  %282 = vmatpush2.bf16.msra.mxu0 0
  %283 = vmatprep.subr.bf16.mxu0 0
  %284 = vmatpush2.bf16.msra.mxu0 0
  %285 = vmatprep.mubr.bf16.mxu0 0
  %286 = vmatmul.mubr.bf16.gmra.mxu0 %v178
  %v287 = vpop.f32.mrf.mxu0
  %v288 = vadd.f32 %v203, %v287
  %v289 = vpop.f32.mrf.mxu0
  %v290 = vpop.f32.mrf.mxu0
  %v291 = vadd.f32 %v203, %v290
  %v292 = vpop.f32.mrf.mxu0
  %293 = vmatprep.mubr.bf16.mxu0 0
  %294 = vmatmul.mubr.bf16.gmra.mxu0 %v179
  %v295 = vpop.f32.mrf.mxu0
  %v296 = vadd.f32 %v203, %v295
  %v297 = vpop.f32.mrf.mxu0
  %v298 = vpop.f32.mrf.mxu0
  %v299 = vadd.f32 %v203, %v298
  %v300 = vpop.f32.mrf.mxu0
  %301 = vmatprep.mubr.bf16.mxu0 0
  %302 = vmatmul.mubr.bf16.gmra.mxu0 %v180
  %v303 = vpop.f32.mrf.mxu0
  %v304 = vadd.f32 %v203, %v303
  %v305 = vpop.f32.mrf.mxu0
  %v306 = vpop.f32.mrf.mxu0
  %v307 = vadd.f32 %v203, %v306
  %v308 = vpop.f32.mrf.mxu0
  %309 = vmatprep.mubr.bf16.mxu0 0
  %310 = vmatmul.mubr.bf16.gmra.mxu0 %v181
  %v311 = vpop.f32.mrf.mxu0
  %v312 = vadd.f32 %v203, %v311
  %v313 = vpop.f32.mrf.mxu0
  %v314 = vpop.f32.mrf.mxu0
  %v315 = vadd.f32 %v203, %v314
  %v316 = vpop.f32.mrf.mxu0
  %317 = vdwg.mxu0
  %v318 = vld [vmem:[%s0] sm:$0xf]
  %v319 = vld [vmem:[%s0 + $0x4] sm:$0xf]
  %v320 = vld [vmem:[%s0 + $0x8] sm:$0xf]
  %v321 = vld [vmem:[%s0 + $0xc] sm:$0xf]
  %v322 = vld [vmem:[%s0 + $0x10] sm:$0xf]
  %v323 = vld [vmem:[%s0 + $0x14] sm:$0xf]
  %v324 = vld [vmem:[%s0 + $0x18] sm:$0xf]
  %v325 = vld [vmem:[%s0 + $0x1c] sm:$0xf]
  %v326 = vmul.f32 %v288, 0.1
  %v327 = vmul.f32 %v291, 0.1
  %v328 = vmul.f32 %v296, 0.1
  %v329 = vmul.f32 %v299, 0.1
  %v330 = vmul.f32 %v304, 0.1
  %v331 = vmul.f32 %v307, 0.1
  %v332 = vmul.f32 %v312, 0.1
  %v333 = vmul.f32 %v315, 0.1
  %v334 = vpack.c.bf16 %v291, %v288
  %v335 = vpack.c.bf16 %v299, %v296
  %v336 = vpack.c.bf16 %v307, %v304
  %v337 = vpack.c.bf16 %v315, %v312
  %v346 = vunpack.c.l.b16 %v318
  %v347 = vunpack.c.l.b16 %v319
  %v348 = vunpack.c.l.b16 %v320
  %v349 = vunpack.c.l.b16 %v321
  %v350 = vunpack.c.l.b16 %v322
  %v351 = vunpack.c.l.b16 %v323
  %v352 = vunpack.c.l.b16 %v324
  %v353 = vunpack.c.l.b16 %v325
  %v354 = vpack.c.b16 %v347, %v346
  %v355 = vpack.c.b16 %v349, %v348
  %v356 = vpack.c.b16 %v351, %v350
  %v357 = vpack.c.b16 %v353, %v352
  %vm358 = vcmask 523264
  %v360 = vsel %vm358, %v354, 0
  %v363 = vsel %vm358, %v355, 0
  %v366 = vsel %vm358, %v356, 0
  %v369 = vsel %vm358, %v357, 0
  %371 = vmatprep.subr.bf16.mxu0 0
  %372 = vmatpush1.bf16.msra.mxu0 0
  %373 = vmatprep.subr.bf16.mxu0 0
  %374 = vmatpush1.bf16.msra.mxu0 0
  %375 = vmatprep.subr.bf16.mxu0 0
  %376 = vmatpush1.bf16.msra.mxu0 0
  %377 = vmatprep.subr.bf16.mxu0 0
  %378 = vmatpush1.bf16.msra.mxu0 0
  %379 = vmatprep.subr.bf16.mxu0 0
  %380 = vmatpush1.bf16.msra.mxu0 %v337
  %381 = vmatprep.subr.bf16.mxu0 0
  %382 = vmatpush1.bf16.msra.mxu0 %v336
  %383 = vmatprep.subr.bf16.mxu0 0
  %384 = vmatpush1.bf16.msra.mxu0 %v335
  %385 = vmatprep.subr.bf16.mxu0 0
  %386 = vmatpush1.bf16.msra.mxu0 %v334
  %387 = vmatprep.subr.bf16.mxu0 0
  %388 = vmatpush2.bf16.msra.mxu0 0
  %389 = vmatprep.subr.bf16.mxu0 0
  %390 = vmatpush2.bf16.msra.mxu0 0
  %391 = vmatprep.subr.bf16.mxu0 0
  %392 = vmatpush2.bf16.msra.mxu0 0
  %393 = vmatprep.subr.bf16.mxu0 0
  %394 = vmatpush2.bf16.msra.mxu0 0
  %395 = vmatprep.subr.bf16.mxu0 0
  %396 = vmatpush2.bf16.msra.mxu0 0
  %397 = vmatprep.subr.bf16.mxu0 0
  %398 = vmatpush2.bf16.msra.mxu0 0
  %399 = vmatprep.subr.bf16.mxu0 0
  %400 = vmatpush2.bf16.msra.mxu0 0
  %401 = vmatprep.subr.bf16.mxu0 0
  %402 = vmatpush2.bf16.msra.mxu0 0
  %403 = vmatprep.mubr.bf16.mxu0 0
  %404 = vmatmul.mubr.bf16.gmra.mxu0 %v360
  %v405 = vpop.f32.mrf.mxu0
  %v406 = vadd.f32 %v326, %v405
  %v407 = vpop.f32.mrf.mxu0
  %v408 = vpop.f32.mrf.mxu0
  %v409 = vadd.f32 %v327, %v408
  %v410 = vpop.f32.mrf.mxu0
  %411 = vmatprep.mubr.bf16.mxu0 0
  %412 = vmatmul.mubr.bf16.gmra.mxu0 %v363
  %v413 = vpop.f32.mrf.mxu0
  %v414 = vadd.f32 %v328, %v413
  %v415 = vpop.f32.mrf.mxu0
  %v416 = vpop.f32.mrf.mxu0
  %v417 = vadd.f32 %v329, %v416
  %v418 = vpop.f32.mrf.mxu0
  %419 = vmatprep.mubr.bf16.mxu0 0
  %420 = vmatmul.mubr.bf16.gmra.mxu0 %v366
  %v421 = vpop.f32.mrf.mxu0
  %v422 = vadd.f32 %v330, %v421
  %v423 = vpop.f32.mrf.mxu0
  %v424 = vpop.f32.mrf.mxu0
  %v425 = vadd.f32 %v331, %v424
  %v426 = vpop.f32.mrf.mxu0
  %427 = vmatprep.mubr.bf16.mxu0 0
  %428 = vmatmul.mubr.bf16.gmra.mxu0 %v369
  %v429 = vpop.f32.mrf.mxu0
  %v430 = vadd.f32 %v332, %v429
  %v431 = vpop.f32.mrf.mxu0
  %v432 = vpop.f32.mrf.mxu0
  %v433 = vadd.f32 %v333, %v432
  %v434 = vpop.f32.mrf.mxu0
  %435 = vdwg.mxu0
  %v436 = vpack.c.bf16 %v409, %v406
  %v437 = vpack.c.bf16 %v417, %v414
  %v438 = vpack.c.bf16 %v425, %v422
  %v439 = vpack.c.bf16 %v433, %v430
  %440 = vmatprep.subr.bf16.mxu0 0
  %441 = vmatpush1.bf16.msra.mxu0 0
  %442 = vmatprep.subr.bf16.mxu0 0
  %443 = vmatpush1.bf16.msra.mxu0 0
  %444 = vmatprep.subr.bf16.mxu0 0
  %445 = vmatpush1.bf16.msra.mxu0 0
  %446 = vmatprep.subr.bf16.mxu0 0
  %447 = vmatpush1.bf16.msra.mxu0 0
  %448 = vmatprep.subr.bf16.mxu0 0
  %449 = vmatpush1.bf16.msra.mxu0 %v439
  %450 = vmatprep.subr.bf16.mxu0 0
  %451 = vmatpush1.bf16.msra.mxu0 %v438
  %452 = vmatprep.subr.bf16.mxu0 0
  %453 = vmatpush1.bf16.msra.mxu0 %v437
  %454 = vmatprep.subr.bf16.mxu0 0
  %455 = vmatpush1.bf16.msra.mxu0 %v436
  %456 = vmatprep.subr.bf16.mxu0 0
  %457 = vmatpush2.bf16.msra.mxu0 0
  %458 = vmatprep.subr.bf16.mxu0 0
  %459 = vmatpush2.bf16.msra.mxu0 0
  %460 = vmatprep.subr.bf16.mxu0 0
  %461 = vmatpush2.bf16.msra.mxu0 0
  %462 = vmatprep.subr.bf16.mxu0 0
  %463 = vmatpush2.bf16.msra.mxu0 0
  %464 = vmatprep.subr.bf16.mxu0 0
  %465 = vmatpush2.bf16.msra.mxu0 0
  %466 = vmatprep.subr.bf16.mxu0 0
  %467 = vmatpush2.bf16.msra.mxu0 0
  %468 = vmatprep.subr.bf16.mxu0 0
  %469 = vmatpush2.bf16.msra.mxu0 0
  %470 = vmatprep.subr.bf16.mxu0 0
  %471 = vmatpush2.bf16.msra.mxu0 0
  %472 = vmatprep.mubr.bf16.mxu0 0
  %473 = vmatmul.mubr.bf16.gmra.mxu0 %v360
  %v474 = vpop.f32.mrf.mxu0
  %v475 = vadd.f32 %v326, %v474
  %v476 = vpop.f32.mrf.mxu0
  %v477 = vpop.f32.mrf.mxu0
  %v478 = vadd.f32 %v327, %v477
  %v479 = vpop.f32.mrf.mxu0
  %480 = vmatprep.mubr.bf16.mxu0 0
  %481 = vmatmul.mubr.bf16.gmra.mxu0 %v363
  %v482 = vpop.f32.mrf.mxu0
  %v483 = vadd.f32 %v328, %v482
  %v484 = vpop.f32.mrf.mxu0
  %v485 = vpop.f32.mrf.mxu0
  %v486 = vadd.f32 %v329, %v485
  %v487 = vpop.f32.mrf.mxu0
  %488 = vmatprep.mubr.bf16.mxu0 0
  %489 = vmatmul.mubr.bf16.gmra.mxu0 %v366
  %v490 = vpop.f32.mrf.mxu0
  %v491 = vadd.f32 %v330, %v490
  %v492 = vpop.f32.mrf.mxu0
  %v493 = vpop.f32.mrf.mxu0
  %v494 = vadd.f32 %v331, %v493
  %v495 = vpop.f32.mrf.mxu0
  %496 = vmatprep.mubr.bf16.mxu0 0
  %497 = vmatmul.mubr.bf16.gmra.mxu0 %v369
  %v498 = vpop.f32.mrf.mxu0
  %v499 = vadd.f32 %v332, %v498
  %v500 = vpop.f32.mrf.mxu0
  %v501 = vpop.f32.mrf.mxu0
  %v502 = vadd.f32 %v333, %v501
  %v503 = vpop.f32.mrf.mxu0
  %504 = vdwg.mxu0
  %v505 = vpack.c.bf16 %v478, %v475
  %v506 = vpack.c.bf16 %v486, %v483
  %v507 = vpack.c.bf16 %v494, %v491
  %v508 = vpack.c.bf16 %v502, %v499
  %509 = vmatprep.subr.bf16.mxu0 0
  %510 = vmatpush1.bf16.msra.mxu0 0
  %511 = vmatprep.subr.bf16.mxu0 0
  %512 = vmatpush1.bf16.msra.mxu0 0
  %513 = vmatprep.subr.bf16.mxu0 0
  %514 = vmatpush1.bf16.msra.mxu0 0
  %515 = vmatprep.subr.bf16.mxu0 0
  %516 = vmatpush1.bf16.msra.mxu0 0
  %517 = vmatprep.subr.bf16.mxu0 0
  %518 = vmatpush1.bf16.msra.mxu0 %v508
  %519 = vmatprep.subr.bf16.mxu0 0
  %520 = vmatpush1.bf16.msra.mxu0 %v507
  %521 = vmatprep.subr.bf16.mxu0 0
  %522 = vmatpush1.bf16.msra.mxu0 %v506
  %523 = vmatprep.subr.bf16.mxu0 0
  %524 = vmatpush1.bf16.msra.mxu0 %v505
  %525 = vmatprep.subr.bf16.mxu0 0
  %526 = vmatpush2.bf16.msra.mxu0 0
  %527 = vmatprep.subr.bf16.mxu0 0
  %528 = vmatpush2.bf16.msra.mxu0 0
  %529 = vmatprep.subr.bf16.mxu0 0
  %530 = vmatpush2.bf16.msra.mxu0 0
  %531 = vmatprep.subr.bf16.mxu0 0
  %532 = vmatpush2.bf16.msra.mxu0 0
  %533 = vmatprep.subr.bf16.mxu0 0
  %534 = vmatpush2.bf16.msra.mxu0 0
  %535 = vmatprep.subr.bf16.mxu0 0
  %536 = vmatpush2.bf16.msra.mxu0 0
  %537 = vmatprep.subr.bf16.mxu0 0
  %538 = vmatpush2.bf16.msra.mxu0 0
  %539 = vmatprep.subr.bf16.mxu0 0
  %540 = vmatpush2.bf16.msra.mxu0 0
  %541 = vmatprep.mubr.bf16.mxu0 0
  %542 = vmatmul.mubr.bf16.gmra.mxu0 %v360
  %v543 = vpop.f32.mrf.mxu0
  %v544 = vadd.f32 %v326, %v543
  %v545 = vpop.f32.mrf.mxu0
  %v546 = vpop.f32.mrf.mxu0
  %v547 = vadd.f32 %v327, %v546
  %v548 = vpop.f32.mrf.mxu0
  %549 = vmatprep.mubr.bf16.mxu0 0
  %550 = vmatmul.mubr.bf16.gmra.mxu0 %v363
  %v551 = vpop.f32.mrf.mxu0
  %v552 = vadd.f32 %v328, %v551
  %v553 = vpop.f32.mrf.mxu0
  %v554 = vpop.f32.mrf.mxu0
  %v555 = vadd.f32 %v329, %v554
  %v556 = vpop.f32.mrf.mxu0
  %557 = vmatprep.mubr.bf16.mxu0 0
  %558 = vmatmul.mubr.bf16.gmra.mxu0 %v366
  %v559 = vpop.f32.mrf.mxu0
  %v560 = vadd.f32 %v330, %v559
  %v561 = vpop.f32.mrf.mxu0
  %v562 = vpop.f32.mrf.mxu0
  %v563 = vadd.f32 %v331, %v562
  %v564 = vpop.f32.mrf.mxu0
  %565 = vmatprep.mubr.bf16.mxu0 0
  %566 = vmatmul.mubr.bf16.gmra.mxu0 %v369
  %v567 = vpop.f32.mrf.mxu0
  %v568 = vadd.f32 %v332, %v567
  %v569 = vpop.f32.mrf.mxu0
  %v570 = vpop.f32.mrf.mxu0
  %v571 = vadd.f32 %v333, %v570
  %v572 = vpop.f32.mrf.mxu0
  %573 = vdwg.mxu0
  %v574 = vpack.c.bf16 %v547, %v544
  %v575 = vpack.c.bf16 %v555, %v552
  %v576 = vpack.c.bf16 %v563, %v560
  %v577 = vpack.c.bf16 %v571, %v568
  %578 = vmatprep.subr.bf16.mxu0 0
  %579 = vmatpush1.bf16.msra.mxu0 0
  %580 = vmatprep.subr.bf16.mxu0 0
  %581 = vmatpush1.bf16.msra.mxu0 0
  %582 = vmatprep.subr.bf16.mxu0 0
  %583 = vmatpush1.bf16.msra.mxu0 0
  %584 = vmatprep.subr.bf16.mxu0 0
  %585 = vmatpush1.bf16.msra.mxu0 0
  %586 = vmatprep.subr.bf16.mxu0 0
  %587 = vmatpush1.bf16.msra.mxu0 %v577
  %588 = vmatprep.subr.bf16.mxu0 0
  %589 = vmatpush1.bf16.msra.mxu0 %v576
  %590 = vmatprep.subr.bf16.mxu0 0
  %591 = vmatpush1.bf16.msra.mxu0 %v575
  %592 = vmatprep.subr.bf16.mxu0 0
  %593 = vmatpush1.bf16.msra.mxu0 %v574
  %594 = vmatprep.subr.bf16.mxu0 0
  %595 = vmatpush2.bf16.msra.mxu0 0
  %596 = vmatprep.subr.bf16.mxu0 0
  %597 = vmatpush2.bf16.msra.mxu0 0
  %598 = vmatprep.subr.bf16.mxu0 0
  %599 = vmatpush2.bf16.msra.mxu0 0
  %600 = vmatprep.subr.bf16.mxu0 0
  %601 = vmatpush2.bf16.msra.mxu0 0
  %602 = vmatprep.subr.bf16.mxu0 0
  %603 = vmatpush2.bf16.msra.mxu0 0
  %604 = vmatprep.subr.bf16.mxu0 0
  %605 = vmatpush2.bf16.msra.mxu0 0
  %606 = vmatprep.subr.bf16.mxu0 0
  %607 = vmatpush2.bf16.msra.mxu0 0
  %608 = vmatprep.subr.bf16.mxu0 0
  %609 = vmatpush2.bf16.msra.mxu0 0
  %610 = vmatprep.mubr.bf16.mxu0 0
  %611 = vmatmul.mubr.bf16.gmra.mxu0 %v360
  %v612 = vpop.f32.mrf.mxu0
  %v613 = vadd.f32 %v326, %v612
  %v614 = vpop.f32.mrf.mxu0
  %v615 = vpop.f32.mrf.mxu0
  %v616 = vadd.f32 %v327, %v615
  %v617 = vpop.f32.mrf.mxu0
  %618 = vmatprep.mubr.bf16.mxu0 0
  %619 = vmatmul.mubr.bf16.gmra.mxu0 %v363
  %v620 = vpop.f32.mrf.mxu0
  %v621 = vadd.f32 %v328, %v620
  %v622 = vpop.f32.mrf.mxu0
  %v623 = vpop.f32.mrf.mxu0
  %v624 = vadd.f32 %v329, %v623
  %v625 = vpop.f32.mrf.mxu0
  %626 = vmatprep.mubr.bf16.mxu0 0
  %627 = vmatmul.mubr.bf16.gmra.mxu0 %v366
  %v628 = vpop.f32.mrf.mxu0
  %v629 = vadd.f32 %v330, %v628
  %v630 = vpop.f32.mrf.mxu0
  %v631 = vpop.f32.mrf.mxu0
  %v632 = vadd.f32 %v331, %v631
  %v633 = vpop.f32.mrf.mxu0
  %634 = vmatprep.mubr.bf16.mxu0 0
  %635 = vmatmul.mubr.bf16.gmra.mxu0 %v369
  %v636 = vpop.f32.mrf.mxu0
  %v637 = vadd.f32 %v332, %v636
  %v638 = vpop.f32.mrf.mxu0
  %v639 = vpop.f32.mrf.mxu0
  %v640 = vadd.f32 %v333, %v639
  %v641 = vpop.f32.mrf.mxu0
  %642 = vdwg.mxu0
  %v643 = vpack.c.bf16 %v616, %v613
  %v644 = vpack.c.bf16 %v624, %v621
  %v645 = vpack.c.bf16 %v632, %v629
  %v646 = vpack.c.bf16 %v640, %v637
  %647 = vmatprep.subr.bf16.mxu0 0
  %648 = vmatpush1.bf16.msra.mxu0 0
  %649 = vmatprep.subr.bf16.mxu0 0
  %650 = vmatpush1.bf16.msra.mxu0 0
  %651 = vmatprep.subr.bf16.mxu0 0
  %652 = vmatpush1.bf16.msra.mxu0 0
  %653 = vmatprep.subr.bf16.mxu0 0
  %654 = vmatpush1.bf16.msra.mxu0 0
  %655 = vmatprep.subr.bf16.mxu0 0
  %656 = vmatpush1.bf16.msra.mxu0 %v646
  %657 = vmatprep.subr.bf16.mxu0 0
  %658 = vmatpush1.bf16.msra.mxu0 %v645
  %659 = vmatprep.subr.bf16.mxu0 0
  %660 = vmatpush1.bf16.msra.mxu0 %v644
  %661 = vmatprep.subr.bf16.mxu0 0
  %662 = vmatpush1.bf16.msra.mxu0 %v643
  %663 = vmatprep.subr.bf16.mxu0 0
  %664 = vmatpush2.bf16.msra.mxu0 0
  %665 = vmatprep.subr.bf16.mxu0 0
  %666 = vmatpush2.bf16.msra.mxu0 0
  %667 = vmatprep.subr.bf16.mxu0 0
  %668 = vmatpush2.bf16.msra.mxu0 0
  %669 = vmatprep.subr.bf16.mxu0 0
  %670 = vmatpush2.bf16.msra.mxu0 0
  %671 = vmatprep.subr.bf16.mxu0 0
  %672 = vmatpush2.bf16.msra.mxu0 0
  %673 = vmatprep.subr.bf16.mxu0 0
  %674 = vmatpush2.bf16.msra.mxu0 0
  %675 = vmatprep.subr.bf16.mxu0 0
  %676 = vmatpush2.bf16.msra.mxu0 0
  %677 = vmatprep.subr.bf16.mxu0 0
  %678 = vmatpush2.bf16.msra.mxu0 0
  %679 = vmatprep.mubr.bf16.mxu0 0
  %680 = vmatmul.mubr.bf16.gmra.mxu0 %v360
  %v681 = vpop.f32.mrf.mxu0
  %v682 = vadd.f32 %v326, %v681
  %v683 = vpop.f32.mrf.mxu0
  %v684 = vpop.f32.mrf.mxu0
  %v685 = vadd.f32 %v327, %v684
  %v686 = vpop.f32.mrf.mxu0
  %687 = vmatprep.mubr.bf16.mxu0 0
  %688 = vmatmul.mubr.bf16.gmra.mxu0 %v363
  %v689 = vpop.f32.mrf.mxu0
  %v690 = vadd.f32 %v328, %v689
  %v691 = vpop.f32.mrf.mxu0
  %v692 = vpop.f32.mrf.mxu0
  %v693 = vadd.f32 %v329, %v692
  %v694 = vpop.f32.mrf.mxu0
  %695 = vmatprep.mubr.bf16.mxu0 0
  %696 = vmatmul.mubr.bf16.gmra.mxu0 %v366
  %v697 = vpop.f32.mrf.mxu0
  %v698 = vadd.f32 %v330, %v697
  %v699 = vpop.f32.mrf.mxu0
  %v700 = vpop.f32.mrf.mxu0
  %v701 = vadd.f32 %v331, %v700
  %v702 = vpop.f32.mrf.mxu0
  %703 = vmatprep.mubr.bf16.mxu0 0
  %704 = vmatmul.mubr.bf16.gmra.mxu0 %v369
  %v705 = vpop.f32.mrf.mxu0
  %v706 = vadd.f32 %v332, %v705
  %v707 = vpop.f32.mrf.mxu0
  %v708 = vpop.f32.mrf.mxu0
  %v709 = vadd.f32 %v333, %v708
  %v710 = vpop.f32.mrf.mxu0
  %711 = vdwg.mxu0
  %v712 = vpack.c.bf16 %v685, %v682
  %v713 = vpack.c.bf16 %v693, %v690
  %v714 = vpack.c.bf16 %v701, %v698
  %v715 = vpack.c.bf16 %v709, %v706
  %716 = vmatprep.subr.bf16.mxu0 0
  %717 = vmatpush1.bf16.msra.mxu0 0
  %718 = vmatprep.subr.bf16.mxu0 0
  %719 = vmatpush1.bf16.msra.mxu0 0
  %720 = vmatprep.subr.bf16.mxu0 0
  %721 = vmatpush1.bf16.msra.mxu0 0
  %722 = vmatprep.subr.bf16.mxu0 0
  %723 = vmatpush1.bf16.msra.mxu0 0
  %724 = vmatprep.subr.bf16.mxu0 0
  %725 = vmatpush1.bf16.msra.mxu0 %v715
  %726 = vmatprep.subr.bf16.mxu0 0
  %727 = vmatpush1.bf16.msra.mxu0 %v714
  %728 = vmatprep.subr.bf16.mxu0 0
  %729 = vmatpush1.bf16.msra.mxu0 %v713
  %730 = vmatprep.subr.bf16.mxu0 0
  %731 = vmatpush1.bf16.msra.mxu0 %v712
  %732 = vmatprep.subr.bf16.mxu0 0
  %733 = vmatpush2.bf16.msra.mxu0 0
  %734 = vmatprep.subr.bf16.mxu0 0
  %735 = vmatpush2.bf16.msra.mxu0 0
  %736 = vmatprep.subr.bf16.mxu0 0
  %737 = vmatpush2.bf16.msra.mxu0 0
  %738 = vmatprep.subr.bf16.mxu0 0
  %739 = vmatpush2.bf16.msra.mxu0 0
  %740 = vmatprep.subr.bf16.mxu0 0
  %741 = vmatpush2.bf16.msra.mxu0 0
  %742 = vmatprep.subr.bf16.mxu0 0
  %743 = vmatpush2.bf16.msra.mxu0 0
  %744 = vmatprep.subr.bf16.mxu0 0
  %745 = vmatpush2.bf16.msra.mxu0 0
  %746 = vmatprep.subr.bf16.mxu0 0
  %747 = vmatpush2.bf16.msra.mxu0 0
  %748 = vmatprep.mubr.bf16.mxu0 0
  %749 = vmatmul.mubr.bf16.gmra.mxu0 %v360
  %v750 = vpop.f32.mrf.mxu0
  %v751 = vadd.f32 %v326, %v750
  %v752 = vpop.f32.mrf.mxu0
  %v753 = vpop.f32.mrf.mxu0
  %v754 = vadd.f32 %v327, %v753
  %v755 = vpop.f32.mrf.mxu0
  %756 = vmatprep.mubr.bf16.mxu0 0
  %757 = vmatmul.mubr.bf16.gmra.mxu0 %v363
  %v758 = vpop.f32.mrf.mxu0
  %v759 = vadd.f32 %v328, %v758
  %v760 = vpop.f32.mrf.mxu0
  %v761 = vpop.f32.mrf.mxu0
  %v762 = vadd.f32 %v329, %v761
  %v763 = vpop.f32.mrf.mxu0
  %764 = vmatprep.mubr.bf16.mxu0 0
  %765 = vmatmul.mubr.bf16.gmra.mxu0 %v366
  %v766 = vpop.f32.mrf.mxu0
  %v767 = vadd.f32 %v330, %v766
  %v768 = vpop.f32.mrf.mxu0
  %v769 = vpop.f32.mrf.mxu0
  %v770 = vadd.f32 %v331, %v769
  %v771 = vpop.f32.mrf.mxu0
  %772 = vmatprep.mubr.bf16.mxu0 0
  %773 = vmatmul.mubr.bf16.gmra.mxu0 %v369
  %v774 = vpop.f32.mrf.mxu0
  %v775 = vadd.f32 %v332, %v774
  %v776 = vpop.f32.mrf.mxu0
  %v777 = vpop.f32.mrf.mxu0
  %v778 = vadd.f32 %v333, %v777
  %v779 = vpop.f32.mrf.mxu0
  %780 = vdwg.mxu0
  %v781 = vpack.c.bf16 %v754, %v751
  %v782 = vpack.c.bf16 %v762, %v759
  %v783 = vpack.c.bf16 %v770, %v767
  %v784 = vpack.c.bf16 %v778, %v775
  %785 = vmatprep.subr.bf16.mxu0 0
  %786 = vmatpush1.bf16.msra.mxu0 0
  %787 = vmatprep.subr.bf16.mxu0 0
  %788 = vmatpush1.bf16.msra.mxu0 0
  %789 = vmatprep.subr.bf16.mxu0 0
  %790 = vmatpush1.bf16.msra.mxu0 0
  %791 = vmatprep.subr.bf16.mxu0 0
  %792 = vmatpush1.bf16.msra.mxu0 0
  %793 = vmatprep.subr.bf16.mxu0 0
  %794 = vmatpush1.bf16.msra.mxu0 %v784
  %795 = vmatprep.subr.bf16.mxu0 0
  %796 = vmatpush1.bf16.msra.mxu0 %v783
  %797 = vmatprep.subr.bf16.mxu0 0
  %798 = vmatpush1.bf16.msra.mxu0 %v782
  %799 = vmatprep.subr.bf16.mxu0 0
  %800 = vmatpush1.bf16.msra.mxu0 %v781
  %801 = vmatprep.subr.bf16.mxu0 0
  %802 = vmatpush2.bf16.msra.mxu0 0
  %803 = vmatprep.subr.bf16.mxu0 0
  %804 = vmatpush2.bf16.msra.mxu0 0
  %805 = vmatprep.subr.bf16.mxu0 0
  %806 = vmatpush2.bf16.msra.mxu0 0
  %807 = vmatprep.subr.bf16.mxu0 0
  %808 = vmatpush2.bf16.msra.mxu0 0
  %809 = vmatprep.subr.bf16.mxu0 0
  %810 = vmatpush2.bf16.msra.mxu0 0
  %811 = vmatprep.subr.bf16.mxu0 0
  %812 = vmatpush2.bf16.msra.mxu0 0
  %813 = vmatprep.subr.bf16.mxu0 0
  %814 = vmatpush2.bf16.msra.mxu0 0
  %815 = vmatprep.subr.bf16.mxu0 0
  %816 = vmatpush2.bf16.msra.mxu0 0
  %817 = vmatprep.mubr.bf16.mxu0 0
  %818 = vmatmul.mubr.bf16.gmra.mxu0 %v360
  %v819 = vpop.f32.mrf.mxu0
  %v820 = vadd.f32 %v326, %v819
  %v821 = vpop.f32.mrf.mxu0
  %v822 = vpop.f32.mrf.mxu0
  %v823 = vadd.f32 %v327, %v822
  %v824 = vpop.f32.mrf.mxu0
  %825 = vmatprep.mubr.bf16.mxu0 0
  %826 = vmatmul.mubr.bf16.gmra.mxu0 %v363
  %v827 = vpop.f32.mrf.mxu0
  %v828 = vadd.f32 %v328, %v827
  %v829 = vpop.f32.mrf.mxu0
  %v830 = vpop.f32.mrf.mxu0
  %v831 = vadd.f32 %v329, %v830
  %v832 = vpop.f32.mrf.mxu0
  %833 = vmatprep.mubr.bf16.mxu0 0
  %834 = vmatmul.mubr.bf16.gmra.mxu0 %v366
  %v835 = vpop.f32.mrf.mxu0
  %v836 = vadd.f32 %v330, %v835
  %v837 = vpop.f32.mrf.mxu0
  %v838 = vpop.f32.mrf.mxu0
  %v839 = vadd.f32 %v331, %v838
  %v840 = vpop.f32.mrf.mxu0
  %841 = vmatprep.mubr.bf16.mxu0 0
  %842 = vmatmul.mubr.bf16.gmra.mxu0 %v369
  %v843 = vpop.f32.mrf.mxu0
  %v844 = vadd.f32 %v332, %v843
  %v845 = vpop.f32.mrf.mxu0
  %v846 = vpop.f32.mrf.mxu0
  %v847 = vadd.f32 %v333, %v846
  %v848 = vpop.f32.mrf.mxu0
  %849 = vdwg.mxu0
  %v850 = vpack.c.bf16 %v823, %v820
  %v851 = vpack.c.bf16 %v831, %v828
  %v852 = vpack.c.bf16 %v839, %v836
  %v853 = vpack.c.bf16 %v847, %v844
  %854 = vmatprep.subr.bf16.mxu0 0
  %855 = vmatpush1.bf16.msra.mxu0 0
  %856 = vmatprep.subr.bf16.mxu0 0
  %857 = vmatpush1.bf16.msra.mxu0 0
  %858 = vmatprep.subr.bf16.mxu0 0
  %859 = vmatpush1.bf16.msra.mxu0 0
  %860 = vmatprep.subr.bf16.mxu0 0
  %861 = vmatpush1.bf16.msra.mxu0 0
  %862 = vmatprep.subr.bf16.mxu0 0
  %863 = vmatpush1.bf16.msra.mxu0 %v853
  %864 = vmatprep.subr.bf16.mxu0 0
  %865 = vmatpush1.bf16.msra.mxu0 %v852
  %866 = vmatprep.subr.bf16.mxu0 0
  %867 = vmatpush1.bf16.msra.mxu0 %v851
  %868 = vmatprep.subr.bf16.mxu0 0
  %869 = vmatpush1.bf16.msra.mxu0 %v850
  %870 = vmatprep.subr.bf16.mxu0 0
  %871 = vmatpush2.bf16.msra.mxu0 0
  %872 = vmatprep.subr.bf16.mxu0 0
  %873 = vmatpush2.bf16.msra.mxu0 0
  %874 = vmatprep.subr.bf16.mxu0 0
  %875 = vmatpush2.bf16.msra.mxu0 0
  %876 = vmatprep.subr.bf16.mxu0 0
  %877 = vmatpush2.bf16.msra.mxu0 0
  %878 = vmatprep.subr.bf16.mxu0 0
  %879 = vmatpush2.bf16.msra.mxu0 0
  %880 = vmatprep.subr.bf16.mxu0 0
  %881 = vmatpush2.bf16.msra.mxu0 0
  %882 = vmatprep.subr.bf16.mxu0 0
  %883 = vmatpush2.bf16.msra.mxu0 0
  %884 = vmatprep.subr.bf16.mxu0 0
  %885 = vmatpush2.bf16.msra.mxu0 0
  %886 = vmatprep.mubr.bf16.mxu0 0
  %887 = vmatmul.mubr.bf16.gmra.mxu0 %v360
  %v888 = vpop.f32.mrf.mxu0
  %v889 = vadd.f32 %v326, %v888
  %v890 = vpop.f32.mrf.mxu0
  %v891 = vpop.f32.mrf.mxu0
  %v892 = vadd.f32 %v327, %v891
  %v893 = vpop.f32.mrf.mxu0
  %894 = vmatprep.mubr.bf16.mxu0 0
  %895 = vmatmul.mubr.bf16.gmra.mxu0 %v363
  %v896 = vpop.f32.mrf.mxu0
  %v897 = vadd.f32 %v328, %v896
  %v898 = vpop.f32.mrf.mxu0
  %v899 = vpop.f32.mrf.mxu0
  %v900 = vadd.f32 %v329, %v899
  %v901 = vpop.f32.mrf.mxu0
  %902 = vmatprep.mubr.bf16.mxu0 0
  %903 = vmatmul.mubr.bf16.gmra.mxu0 %v366
  %v904 = vpop.f32.mrf.mxu0
  %v905 = vadd.f32 %v330, %v904
  %v906 = vpop.f32.mrf.mxu0
  %v907 = vpop.f32.mrf.mxu0
  %v908 = vadd.f32 %v331, %v907
  %v909 = vpop.f32.mrf.mxu0
  %910 = vmatprep.mubr.bf16.mxu0 0
  %911 = vmatmul.mubr.bf16.gmra.mxu0 %v369
  %v912 = vpop.f32.mrf.mxu0
  %v913 = vadd.f32 %v332, %v912
  %v914 = vpop.f32.mrf.mxu0
  %v915 = vpop.f32.mrf.mxu0
  %v916 = vadd.f32 %v333, %v915
  %v917 = vpop.f32.mrf.mxu0
  %918 = vdwg.mxu0
  %v919 = vpack.c.bf16 %v892, %v889
  %v920 = vpack.c.bf16 %v900, %v897
  %v921 = vpack.c.bf16 %v908, %v905
  %v922 = vpack.c.bf16 %v916, %v913
  %923 = vmatprep.subr.bf16.mxu0 0
  %924 = vmatpush1.bf16.msra.mxu0 0
  %925 = vmatprep.subr.bf16.mxu0 0
  %926 = vmatpush1.bf16.msra.mxu0 0
  %927 = vmatprep.subr.bf16.mxu0 0
  %928 = vmatpush1.bf16.msra.mxu0 0
  %929 = vmatprep.subr.bf16.mxu0 0
  %930 = vmatpush1.bf16.msra.mxu0 0
  %931 = vmatprep.subr.bf16.mxu0 0
  %932 = vmatpush1.bf16.msra.mxu0 %v922
  %933 = vmatprep.subr.bf16.mxu0 0
  %934 = vmatpush1.bf16.msra.mxu0 %v921
  %935 = vmatprep.subr.bf16.mxu0 0
  %936 = vmatpush1.bf16.msra.mxu0 %v920
  %937 = vmatprep.subr.bf16.mxu0 0
  %938 = vmatpush1.bf16.msra.mxu0 %v919
  %939 = vmatprep.subr.bf16.mxu0 0
  %940 = vmatpush2.bf16.msra.mxu0 0
  %941 = vmatprep.subr.bf16.mxu0 0
  %942 = vmatpush2.bf16.msra.mxu0 0
  %943 = vmatprep.subr.bf16.mxu0 0
  %944 = vmatpush2.bf16.msra.mxu0 0
  %945 = vmatprep.subr.bf16.mxu0 0
  %946 = vmatpush2.bf16.msra.mxu0 0
  %947 = vmatprep.subr.bf16.mxu0 0
  %948 = vmatpush2.bf16.msra.mxu0 0
  %949 = vmatprep.subr.bf16.mxu0 0
  %950 = vmatpush2.bf16.msra.mxu0 0
  %951 = vmatprep.subr.bf16.mxu0 0
  %952 = vmatpush2.bf16.msra.mxu0 0
  %953 = vmatprep.subr.bf16.mxu0 0
  %954 = vmatpush2.bf16.msra.mxu0 0
  %955 = vmatprep.mubr.bf16.mxu0 0
  %956 = vmatmul.mubr.bf16.gmra.mxu0 %v360
  %v957 = vpop.f32.mrf.mxu0
  %v958 = vadd.f32 %v326, %v957
  %v959 = vpop.f32.mrf.mxu0
  %v960 = vpop.f32.mrf.mxu0
  %v961 = vadd.f32 %v327, %v960
  %v962 = vpop.f32.mrf.mxu0
  %963 = vmatprep.mubr.bf16.mxu0 0
  %964 = vmatmul.mubr.bf16.gmra.mxu0 %v363
  %v965 = vpop.f32.mrf.mxu0
  %v966 = vadd.f32 %v328, %v965
  %v967 = vpop.f32.mrf.mxu0
  %v968 = vpop.f32.mrf.mxu0
  %v969 = vadd.f32 %v329, %v968
  %v970 = vpop.f32.mrf.mxu0
  %971 = vmatprep.mubr.bf16.mxu0 0
  %972 = vmatmul.mubr.bf16.gmra.mxu0 %v366
  %v973 = vpop.f32.mrf.mxu0
  %v974 = vadd.f32 %v330, %v973
  %v975 = vpop.f32.mrf.mxu0
  %v976 = vpop.f32.mrf.mxu0
  %v977 = vadd.f32 %v331, %v976
  %v978 = vpop.f32.mrf.mxu0
  %979 = vmatprep.mubr.bf16.mxu0 0
  %980 = vmatmul.mubr.bf16.gmra.mxu0 %v369
  %v981 = vpop.f32.mrf.mxu0
  %v982 = vadd.f32 %v332, %v981
  %v983 = vpop.f32.mrf.mxu0
  %v984 = vpop.f32.mrf.mxu0
  %v985 = vadd.f32 %v333, %v984
  %v986 = vpop.f32.mrf.mxu0
  %987 = vdwg.mxu0
  %v988 = vpack.c.bf16 %v961, %v958
  %v989 = vpack.c.bf16 %v969, %v966
  %v990 = vpack.c.bf16 %v977, %v974
  %v991 = vpack.c.bf16 %v985, %v982
  %992 = vmatprep.subr.bf16.mxu0 0
  %993 = vmatpush1.bf16.msra.mxu0 0
  %994 = vmatprep.subr.bf16.mxu0 0
  %995 = vmatpush1.bf16.msra.mxu0 0
  %996 = vmatprep.subr.bf16.mxu0 0
  %997 = vmatpush1.bf16.msra.mxu0 0
  %998 = vmatprep.subr.bf16.mxu0 0
  %999 = vmatpush1.bf16.msra.mxu0 0
  %1000 = vmatprep.subr.bf16.mxu0 0
  %1001 = vmatpush1.bf16.msra.mxu0 %v991
  %1002 = vmatprep.subr.bf16.mxu0 0
  %1003 = vmatpush1.bf16.msra.mxu0 %v990
  %1004 = vmatprep.subr.bf16.mxu0 0
  %1005 = vmatpush1.bf16.msra.mxu0 %v989
  %1006 = vmatprep.subr.bf16.mxu0 0
  %1007 = vmatpush1.bf16.msra.mxu0 %v988
  %1008 = vmatprep.subr.bf16.mxu0 0
  %1009 = vmatpush2.bf16.msra.mxu0 0
  %1010 = vmatprep.subr.bf16.mxu0 0
  %1011 = vmatpush2.bf16.msra.mxu0 0
  %1012 = vmatprep.subr.bf16.mxu0 0
  %1013 = vmatpush2.bf16.msra.mxu0 0
  %1014 = vmatprep.subr.bf16.mxu0 0
  %1015 = vmatpush2.bf16.msra.mxu0 0
  %1016 = vmatprep.subr.bf16.mxu0 0
  %1017 = vmatpush2.bf16.msra.mxu0 0
  %1018 = vmatprep.subr.bf16.mxu0 0
  %1019 = vmatpush2.bf16.msra.mxu0 0
  %1020 = vmatprep.subr.bf16.mxu0 0
  %1021 = vmatpush2.bf16.msra.mxu0 0
  %1022 = vmatprep.subr.bf16.mxu0 0
  %1023 = vmatpush2.bf16.msra.mxu0 0
  %1024 = vmatprep.mubr.bf16.mxu0 0
  %1025 = vmatmul.mubr.bf16.gmra.mxu0 %v360
  %v1026 = vpop.f32.mrf.mxu0
  %v1027 = vadd.f32 %v326, %v1026
  %v1028 = vpop.f32.mrf.mxu0
  %v1029 = vpop.f32.mrf.mxu0
  %v1030 = vadd.f32 %v327, %v1029
  %v1031 = vpop.f32.mrf.mxu0
  %1032 = vmatprep.mubr.bf16.mxu0 0
  %1033 = vmatmul.mubr.bf16.gmra.mxu0 %v363
  %v1034 = vpop.f32.mrf.mxu0
  %v1035 = vadd.f32 %v328, %v1034
  %v1036 = vpop.f32.mrf.mxu0
  %v1037 = vpop.f32.mrf.mxu0
  %v1038 = vadd.f32 %v329, %v1037
  %v1039 = vpop.f32.mrf.mxu0
  %1040 = vmatprep.mubr.bf16.mxu0 0
  %1041 = vmatmul.mubr.bf16.gmra.mxu0 %v366
  %v1042 = vpop.f32.mrf.mxu0
  %v1043 = vadd.f32 %v330, %v1042
  %v1044 = vpop.f32.mrf.mxu0
  %v1045 = vpop.f32.mrf.mxu0
  %v1046 = vadd.f32 %v331, %v1045
  %v1047 = vpop.f32.mrf.mxu0
  %1048 = vmatprep.mubr.bf16.mxu0 0
  %1049 = vmatmul.mubr.bf16.gmra.mxu0 %v369
  %v1050 = vpop.f32.mrf.mxu0
  %v1051 = vadd.f32 %v332, %v1050
  %v1052 = vpop.f32.mrf.mxu0
  %v1053 = vpop.f32.mrf.mxu0
  %v1054 = vadd.f32 %v333, %v1053
  %v1055 = vpop.f32.mrf.mxu0
  %1056 = vdwg.mxu0
  %1057 = vst [vmem:[%s7] sm:$0xff] %v1027
  %1058 = vst [vmem:[%s7 + $0x8] sm:$0xff] %v1030
  %1059 = vst [vmem:[%s7 + $0x10] sm:$0xff] %v1035
  %1060 = vst [vmem:[%s7 + $0x18] sm:$0xff] %v1038
  %1061 = vst [vmem:[%s7 + $0x20] sm:$0xff] %v1043
  %1062 = vst [vmem:[%s7 + $0x28] sm:$0xff] %v1046
  %1063 = vst [vmem:[%s7 + $0x30] sm:$0xff] %v1051
  %1064 = vst [vmem:[%s7 + $0x38] sm:$0xff] %v1054
  // Predicated region
  $region26: #{forward.1} parent=0 // pred_check
    _
  $region27: #{forward.1} parent=0 // pred_check_branch
    %1066 = sbr.rel (0) target = $region29
  $region28: #{forward.1} parent=0 // pred_region
    _
  $region29: #{forward.1} parent=0 // pred_fallthru
    _
  // Predicated region
  $region30: #{forward.1} parent=0 // pred_check
    _
  $region31: #{forward.1} parent=0 // pred_check_branch
    %1068 = sbr.rel (0) target = $region33
  $region32: #{forward.1} parent=0 // pred_region
    _
  $region33: #{forward.1} parent=0 // pred_fallthru
    _
  // Predicated region
  $region34: #{forward.1} parent=0 // pred_check
    _
  $region35: #{forward.1} parent=0 // pred_check_branch
    %1070 = sbr.rel (0) target = $region37
  $region36: #{forward.1} parent=0 // pred_region
    _
  $region37: #{forward.1} parent=0 // pred_fallthru
    _
  // Predicated region
  $region38: #{forward.1} parent=0 // pred_check
    _
  $region39: #{forward.1} parent=0 // pred_check_branch
    %1072 = sbr.rel (0) target = $region41
  $region40: #{forward.1} parent=0 // pred_region
    _
  $region41: #{forward.1} parent=0 // pred_fallthru
    _

</llo_original>
